<compile_context>
chip_gen: v7x
topology: tpu7x:2x2x1
jax: 0.10.0
libtpu: 0.0.40
codegen_flags: <defaults>
</compile_context>

<pallas_src>
import functools

import jax
import jax.numpy as jnp
from jax.experimental import pallas as pl
from jax.experimental.pallas import tpu as pltpu

_OUT_LANES = 128


def _ce_kernel(ignore_label, hw, tile_p, tiles_per_split, has_pw, exp_dtype, *refs):
    refs = list(refs)
    pred_ref = refs.pop(0)                      # (1, c, tile_p) logits
    tgt_ref = refs.pop(0)                       # (1, 1, tile_p) int32 labels
    pw_ref = refs.pop(0) if has_pw else None    # (1, 1, tile_p) per-pixel weight
    out_ref, acc = refs                         # (1, 2, 128) f32 ; (2, tile_p) f32

    s = pl.program_id(1)
    i = pl.program_id(2)

    @pl.when(i == 0)
    def _():
        acc[...] = jnp.zeros_like(acc)

    logits = pred_ref[0].astype(jnp.float32)    # (c, tile_p)
    c = logits.shape[0]
    tgt = tgt_ref[0]                            # (1, tile_p)

    # Lane mask for the (possibly) ragged final tile of this (b, s) pass: the
    # out-of-bounds lanes of a partial block hold stale data and must be ignored.
    start = (s * tiles_per_split + i) * tile_p
    lane = jax.lax.broadcasted_iota(jnp.int32, (1, tile_p), 1)
    valid = (lane < (hw - start)) & (tgt >= 0) & (tgt != ignore_label)
    tgt_safe = jnp.where(valid, tgt, 0)

    # Numerically stable logsumexp over the class (sublane) axis.  `m` cancels
    # in (lse - picked), so the gather also uses the shifted logits: only one
    # select pass over the (c, tile_p) block.
    m = jnp.max(logits, axis=0, keepdims=True)              # (1, tile_p)
    shifted = logits - m                                     # (c, tile_p)
    # exp on the EUP; bf16 exp (v6e/v7x ~2x transcendental rate) for bf16 inputs.
    p = jnp.exp(shifted.astype(exp_dtype))
    lse_shift = jnp.log(jnp.sum(p, axis=0, keepdims=True, dtype=jnp.float32))

    # One-hot from a (c, 1) iota; the compare broadcasts against (1, tile_p),
    # so no (c, tile_p) int32 temporary is materialized.
    iota_c = jax.lax.broadcasted_iota(jnp.int32, (c, 1), 0)
    onehot = iota_c == tgt_safe                              # (c, tile_p) bool
    picked_shift = jnp.sum(jnp.where(onehot, shifted, 0.0), axis=0, keepdims=True)

    loss = lse_shift - picked_shift                          # (1, tile_p)
    if has_pw:
        loss = loss * pw_ref[0].astype(jnp.float32)

    # Lane-wide accumulation (pure VPU adds); cross-lane reduce is deferred.
    acc[0:1, :] += jnp.where(valid, loss, 0.0)
    acc[1:2, :] += jnp.where(valid, 1.0, 0.0)

    # One packed, lane-dense output row per (b, s) pass.
    @pl.when(i == pl.num_programs(2) - 1)
    def _():
        totals = jnp.sum(acc[...], axis=1, keepdims=True)    # (2, 1): [loss, count]
        out_ref[0] = jnp.broadcast_to(totals, (2, _OUT_LANES))


def _select_tile_p(c, hw, elem_bytes, pw_bytes, vmem_budget,
                   target_block_bytes=2 << 20, max_lanes=8192):
    """Largest 128-aligned lane tile whose logits block is ~target_block_bytes
    and that fits the VMEM budget (double-buffered streams + live temps)."""
    if hw <= 256:
        return hw  # full-extent block along the pixel axis is always legal
    hw_aligned = pl.cdiv(hw, 128) * 128
    # ~1-2 MiB logits blocks already amortize the ~0.35 us/step overhead near
    # the HBM roofline; larger tiles only burn VMEM and vreg pressure.
    target_lanes = max(512, min(max_lanes,
                                target_block_bytes // max(1, c * elem_bytes)))
    # Per-lane VMEM: double-buffered input streams (logits + int32 target +
    # optional per-pixel weight) + ~7 live f32 (c, tile) temporaries in the
    # body + the (2, tile) f32 accumulator scratch.
    bytes_per_lane = 2 * (c * elem_bytes + 4 + pw_bytes) + 28 * c + 8
    budget_lanes = max(128, (vmem_budget - (4 << 20)) // bytes_per_lane)
    tile = min(hw_aligned, target_lanes, budget_lanes)
    return max(128, (tile // 128) * 128)


def cross_entropy_2d_ignore(predict, target, weight=None, weight_map=None,
                            size_average=True, ignore_label=255, tile_p=None):
    """predict: (n,c,h,w), target: (n,h,w) int, weight: (c,), weight_map: (n,h,w)."""
    n, c, h, w = predict.shape
    hw = h * w

    # Free reshapes only: no transpose, no padding, and no widening of the
    # dominant logits stream (bf16 stays bf16 in HBM).
    pred = predict.reshape(n, c, hw)
    tgt = target.reshape(n, 1, hw).astype(jnp.int32)
    is_bf16 = pred.dtype == jnp.bfloat16

    # Fold the class weights (gathered per pixel) and the pixel weight map into
    # one small per-pixel weight stream: removes the second one-hot pass over
    # the (c, tile_p) block inside the kernel for ~hw*4 B of extra traffic.
    pw = None
    if weight is not None:
        tgt_clamped = jnp.clip(target.reshape(n, hw).astype(jnp.int32), 0, c - 1)
        pw = jnp.take(weight.astype(jnp.float32), tgt_clamped, axis=0)
    if weight_map is not None:
        wm = weight_map.reshape(n, hw).astype(jnp.float32)
        pw = wm if pw is None else pw * wm
    has_pw = pw is not None
    if has_pw:
        if is_bf16:  # keep the stream narrow on memory-bound generations
            pw = pw.astype(jnp.bfloat16)
        pw = pw.reshape(n, 1, hw)

    elem_bytes = pred.dtype.itemsize
    pw_bytes = pw.dtype.itemsize if has_pw else 0

    # VMEM budget: ~75% of physical (v7x: 48 of 64 MiB/TC; v5e/v6e capped at 96 MiB).
    try:
        vmem_cap = pltpu.get_tpu_info().vmem_capacity_bytes
    except Exception:
        vmem_cap = 64 * 1024 * 1024  # conservative fallback (v7x-sized)
    vmem_budget = min((vmem_cap * 3) // 4, 96 * 1024 * 1024)

    if tile_p is None:
        tile_p = _select_tile_p(c, hw, elem_bytes, pw_bytes, vmem_budget)
        # Force an even hw-tile count so the reduction always splits across both
        # TensorCores at batch=1 (v7x megacore); costs at most one extra
        # partially-masked tile and is a no-op on single-TC chips.
        if pl.cdiv(hw, tile_p) >= 2 and pl.cdiv(hw, tile_p) % 2 == 1:
            t = tile_p
            while t > 128 and pl.cdiv(hw, t) % 2 == 1:
                t -= 128
            if pl.cdiv(hw, t) % 2 == 0:
                tile_p = t

    num_tiles = pl.cdiv(hw, tile_p)
    n_splits = 2 if (num_tiles >= 2 and num_tiles % 2 == 0) else 1
    tiles_per_split = num_tiles // n_splits

    inputs = [pred, tgt]
    in_specs = [
        pl.BlockSpec((1, c, tile_p),
                     lambda b, s, i: (b, 0, s * tiles_per_split + i)),
        pl.BlockSpec((1, 1, tile_p),
                     lambda b, s, i: (b, 0, s * tiles_per_split + i)),
    ]
    if has_pw:
        inputs.append(pw)
        in_specs.append(pl.BlockSpec((1, 1, tile_p),
                                     lambda b, s, i: (b, 0, s * tiles_per_split + i)))

    out_rows = n * n_splits
    out_specs = pl.BlockSpec((1, 2, _OUT_LANES),
                             lambda b, s, i: (b * n_splits + s, 0, 0))
    out_shape = jax.ShapeDtypeStruct((out_rows, 2, _OUT_LANES), jnp.float32)

    exp_dtype = jnp.bfloat16 if is_bf16 else jnp.float32
    kernel = functools.partial(_ce_kernel, ignore_label, hw, tile_p,
                               tiles_per_split, has_pw, exp_dtype)

    parts = pl.pallas_call(
        kernel,
        out_shape=out_shape,
        grid_spec=pltpu.PrefetchScalarGridSpec(
            num_scalar_prefetch=0,
            grid=(n, n_splits, tiles_per_split),
            in_specs=in_specs,
            out_specs=out_specs,
            scratch_shapes=[pltpu.VMEM((2, tile_p), jnp.float32)],
        ),
        compiler_params=pltpu.CompilerParams(
            dimension_semantics=("parallel", "parallel", "arbitrary"),
            vmem_limit_bytes=int(vmem_budget),
        ),
    )(*inputs)

    loss_sum = jnp.sum(parts[:, 0, 0])
    count = jnp.sum(parts[:, 1, 0])
    reduced = loss_sum / jnp.maximum(count, 1.0) if size_average else loss_sum
    # No valid pixels -> 0.0 (matches the torch.zeros(1) fallback, as a scalar).
    return jnp.where(count > 0, reduced, jnp.float32(0.0))


def _reference(predict, target, weight, weight_map, size_average, ignore_label):
    """Pure-JAX reference mirroring the PyTorch forward."""
    n, c, h, w = predict.shape
    logits = jnp.transpose(predict, (0, 2, 3, 1)).reshape(-1, c).astype(jnp.float32)
    tgt = target.reshape(-1).astype(jnp.int32)
    valid = (tgt >= 0) & (tgt != ignore_label)
    tgt_safe = jnp.where(valid, tgt, 0)
    lse = jax.scipy.special.logsumexp(logits, axis=-1)
    picked = jnp.take_along_axis(logits, tgt_safe[:, None], axis=-1)[:, 0]
    nll = lse - picked
    if weight is not None:
        nll = nll * weight.astype(jnp.float32)[tgt_safe]
    if weight_map is not None:
        nll = nll * weight_map.reshape(-1).astype(jnp.float32)
    nll = jnp.where(valid, nll, 0.0)
    cnt = valid.sum()
    tot = nll.sum()
    res = tot / cnt if size_average else tot
    return jnp.where(cnt > 0, res, 0.0)


if __name__ == "__main__":
    key = jax.random.PRNGKey(0)
    keys = jax.random.split(key, 4)
    ignore_label = 255

    def make_inputs(kk, n, c, h, w, dtype=jnp.float32, ignore_p=0.2):
        k1, k2, k3, k4, k5 = jax.random.split(kk, 5)
        predict = jax.random.normal(k1, (n, c, h, w), jnp.float32).astype(dtype)
        target = jax.random.randint(k2, (n, h, w), 0, c).astype(jnp.int32)
        ignore_mask = jax.random.bernoulli(k3, ignore_p, (n, h, w))
        target = jnp.where(ignore_mask, ignore_label, target)
        class_weight = jax.random.uniform(k4, (c,), jnp.float32, 0.5, 1.5)
        weight_map = jax.random.uniform(k5, (n, h, w), jnp.float32, 0.0, 2.0)
        return predict, target, class_weight, weight_map

    # 1) Full-featured: class weights + pixel weight map, mean reduction.
    p, t, cw, wm = make_inputs(keys[0], 2, 4, 16, 16)
    out = jax.block_until_ready(cross_entropy_2d_ignore(
        p, t, weight=cw, weight_map=wm, size_average=True, ignore_label=ignore_label))
    ref = _reference(p, t, cw, wm, True, ignore_label)
    assert jnp.allclose(out, ref, rtol=1e-5, atol=1e-5), (out, ref)

    # 2) No weights (per-pixel weight stream dropped), sum reduction.
    out = jax.block_until_ready(cross_entropy_2d_ignore(
        p, t, size_average=False, ignore_label=ignore_label))
    ref = _reference(p, t, None, None, False, ignore_label)
    assert jnp.allclose(out, ref, rtol=1e-5, atol=1e-5), (out, ref)

    # 3) Ragged last tile + 2-way split: hw=429 with tile_p=128 -> 4 tiles.
    p, t, cw, wm = make_inputs(keys[1], 1, 5, 13, 33)
    out = jax.block_until_ready(cross_entropy_2d_ignore(
        p, t, weight=cw, weight_map=wm, size_average=False,
        ignore_label=ignore_label, tile_p=128))
    ref = _reference(p, t, cw, wm, False, ignore_label)
    assert jnp.allclose(out, ref, rtol=1e-5, atol=1e-5), (out, ref)

    # 4) Auto tile selection + forced-even tile count (hw=24576 -> 4x8064 lanes).
    p, t, _, _ = make_inputs(keys[2], 1, 4, 128, 192)
    out = jax.block_until_ready(cross_entropy_2d_ignore(
        p, t, size_average=True, ignore_label=ignore_label))
    ref = _reference(p, t, None, None, True, ignore_label)
    assert jnp.allclose(out, ref, rtol=1e-5, atol=1e-5), (out, ref)

    # 5) bf16 logits path (bf16 exp on the EUP, bf16 per-pixel weight stream).
    p, t, cw, wm = make_inputs(keys[3], 2, 8, 16, 24, dtype=jnp.bfloat16)
    out = jax.block_until_ready(cross_entropy_2d_ignore(
        p, t, weight=cw, weight_map=wm, size_average=True, ignore_label=ignore_label))
    ref = _reference(p, t, cw, wm, True, ignore_label)
    assert jnp.allclose(out, ref, rtol=3e-2, atol=3e-2), (out, ref)

    print("KERNEL_OK")
</pallas_src>

<mosaic_0001>
module attributes {stable_mosaic.version = 11 : i64} {
  func.func @_ce_kernel(%arg0: i32, %arg1: i32, %arg2: i32, %arg3: memref<1x4x256xf32, #tpu.memory_space<vmem>>, %arg4: memref<1x1x256xi32, #tpu.memory_space<vmem>>, %arg5: memref<1x1x256xf32, #tpu.memory_space<vmem>>, %arg6: memref<1x2x128xf32, #tpu.memory_space<vmem>>, %arg7: memref<2x256xf32, #tpu.memory_space<vmem>>) attributes {dimension_semantics = [#tpu.dimension_semantics<parallel>, #tpu.dimension_semantics<parallel>, #tpu.dimension_semantics<arbitrary>], iteration_bounds = array<i64: 2, 1, 1>, scalar_prefetch = 0 : i64, scratch_operands = 1 : i64, tpu.core_type = #tpu.core_type<tc>, window_params = [{transform_indices = @transform_0, window_bounds = array<i64: 1, 4, 256>}, {transform_indices = @transform_1, window_bounds = array<i64: 1, 1, 256>}, {transform_indices = @transform_2, window_bounds = array<i64: 1, 1, 256>}, {transform_indices = @transform_3, window_bounds = array<i64: 1, 2, 128>}]} {
    %c0_i32 = arith.constant 0 : i32
    %0 = arith.cmpi eq, %arg2, %c0_i32 : i32
    %1 = arith.extui %0 : i1 to i32
    %c0_i32_0 = arith.constant 0 : i32
    %2 = arith.cmpi ne, %1, %c0_i32_0 : i32
    scf.if %2 {
      %cst_27 = arith.constant 0.000000e+00 : f32
      %56 = vector.broadcast %cst_27 : f32 to vector<2x256xf32>
      %c0_28 = arith.constant 0 : index
      %c0_29 = arith.constant 0 : index
      %57 = vector.load %arg7[%c0_28, %c0_29] : memref<2x256xf32, #tpu.memory_space<vmem>>, vector<2x256xf32>
      tpu.vector_store %arg7[%c0_28, %c0_29], %56 {strides = array<i32>} : memref<2x256xf32, #tpu.memory_space<vmem>>, vector<2x256xf32>,
    } else {
    }
    %c0 = arith.constant 0 : index
    %c0_1 = arith.constant 0 : index
    %c0_2 = arith.constant 0 : index
    %3 = vector.load %arg3[%c0, %c0_1, %c0_2] : memref<1x4x256xf32, #tpu.memory_space<vmem>>, vector<1x4x256xf32>
    %4 = vector.shape_cast %3 : vector<1x4x256xf32> to vector<4x256xf32>
    %c0_3 = arith.constant 0 : index
    %c0_4 = arith.constant 0 : index
    %c0_5 = arith.constant 0 : index
    %5 = vector.load %arg4[%c0_3, %c0_4, %c0_5] : memref<1x1x256xi32, #tpu.memory_space<vmem>>, vector<1x1x256xi32>
    %6 = vector.shape_cast %5 : vector<1x1x256xi32> to vector<1x256xi32>
    %c1_i32 = arith.constant 1 : i32
    %7 = arith.muli %arg1, %c1_i32 : i32
    %8 = arith.addi %7, %arg2 : i32
    %c256_i32 = arith.constant 256 : i32
    %9 = arith.muli %8, %c256_i32 : i32
    %10 = tpu.iota {dimensions = array<i32: 1>} : vector<1x256xi32>
    %c256_i32_6 = arith.constant 256 : i32
    %11 = arith.subi %c256_i32_6, %9 : i32
    %12 = vector.broadcast %11 : i32 to vector<1x256xi32>
    %13 = arith.cmpi slt, %10, %12 : vector<1x256xi32>
    %c0_i32_7 = arith.constant 0 : i32
    %14 = vector.broadcast %c0_i32_7 : i32 to vector<1x256xi32>
    %15 = arith.cmpi sge, %6, %14 : vector<1x256xi32>
    %16 = arith.andi %13, %15 : vector<1x256xi1>
    %c255_i32 = arith.constant 255 : i32
    %17 = vector.broadcast %c255_i32 : i32 to vector<1x256xi32>
    %18 = arith.cmpi ne, %6, %17 : vector<1x256xi32>
    %19 = arith.andi %16, %18 : vector<1x256xi1>
    %c0_i32_8 = arith.constant 0 : i32
    %20 = vector.broadcast %c0_i32_8 : i32 to vector<1x256xi32>
    %21 = arith.select %19, %6, %20 : vector<1x256xi1>, vector<1x256xi32>
    %cst = arith.constant dense<0xFF800000> : vector<256xf32>
    %22 = vector.multi_reduction <maximumf>, %4, %cst [0] : vector<4x256xf32> to vector<256xf32>
    %23 = vector.shape_cast %22 : vector<256xf32> to vector<1x256xf32>
    %24 = vector.broadcast %23 : vector<1x256xf32> to vector<4x256xf32>
    %25 = arith.subf %4, %24 : vector<4x256xf32>
    %26 = math.exp %25 : vector<4x256xf32>
    %cst_9 = arith.constant dense<0.000000e+00> : vector<256xf32>
    %27 = vector.multi_reduction <add>, %26, %cst_9 [0] : vector<4x256xf32> to vector<256xf32>
    %28 = vector.shape_cast %27 : vector<256xf32> to vector<1x256xf32>
    %29 = math.log %28 : vector<1x256xf32>
    %30 = tpu.iota {dimensions = array<i32: 0>} : vector<4x1xi32>
    %31 = vector.broadcast %30 : vector<4x1xi32> to vector<4x256xi32>
    %32 = vector.broadcast %21 : vector<1x256xi32> to vector<4x256xi32>
    %33 = arith.cmpi eq, %31, %32 : vector<4x256xi32>
    %cst_10 = arith.constant 0.000000e+00 : f32
    %34 = vector.broadcast %cst_10 : f32 to vector<4x256xf32>
    %35 = arith.select %33, %25, %34 : vector<4x256xi1>, vector<4x256xf32>
    %cst_11 = arith.constant dense<0.000000e+00> : vector<256xf32>
    %36 = vector.multi_reduction <add>, %35, %cst_11 [0] : vector<4x256xf32> to vector<256xf32>
    %37 = vector.shape_cast %36 : vector<256xf32> to vector<1x256xf32>
    %38 = arith.subf %29, %37 : vector<1x256xf32>
    %c0_12 = arith.constant 0 : index
    %c0_13 = arith.constant 0 : index
    %c0_14 = arith.constant 0 : index
    %39 = vector.load %arg5[%c0_12, %c0_13, %c0_14] : memref<1x1x256xf32, #tpu.memory_space<vmem>>, vector<1x1x256xf32>
    %40 = vector.shape_cast %39 : vector<1x1x256xf32> to vector<1x256xf32>
    %41 = arith.mulf %38, %40 : vector<1x256xf32>
    %c0_15 = arith.constant 0 : index
    %c0_16 = arith.constant 0 : index
    %42 = vector.load %arg7[%c0_15, %c0_16] : memref<2x256xf32, #tpu.memory_space<vmem>>, vector<1x256xf32>
    %cst_17 = arith.constant 0.000000e+00 : f32
    %43 = vector.broadcast %cst_17 : f32 to vector<1x256xf32>
    %44 = arith.select %19, %41, %43 : vector<1x256xi1>, vector<1x256xf32>
    %45 = arith.addf %42, %44 : vector<1x256xf32>
    %c0_18 = arith.constant 0 : index
    %c0_19 = arith.constant 0 : index
    %46 = vector.load %arg7[%c0_18, %c0_19] : memref<2x256xf32, #tpu.memory_space<vmem>>, vector<1x256xf32>
    tpu.vector_store %arg7[%c0_18, %c0_19], %45 {strides = array<i32>} : memref<2x256xf32, #tpu.memory_space<vmem>>, vector<1x256xf32>,
    %c1 = arith.constant 1 : index
    %c0_20 = arith.constant 0 : index
    %47 = vector.load %arg7[%c1, %c0_20] : memref<2x256xf32, #tpu.memory_space<vmem>>, vector<1x256xf32>
    %cst_21 = arith.constant 1.000000e+00 : f32
    %cst_22 = arith.constant 0.000000e+00 : f32
    %48 = vector.broadcast %cst_21 : f32 to vector<1x256xf32>
    %49 = vector.broadcast %cst_22 : f32 to vector<1x256xf32>
    %50 = arith.select %19, %48, %49 : vector<1x256xi1>, vector<1x256xf32>
    %51 = arith.addf %47, %50 : vector<1x256xf32>
    %c1_23 = arith.constant 1 : index
    %c0_24 = arith.constant 0 : index
    %52 = vector.load %arg7[%c1_23, %c0_24] : memref<2x256xf32, #tpu.memory_space<vmem>>, vector<1x256xf32>
    tpu.vector_store %arg7[%c1_23, %c0_24], %51 {strides = array<i32>} : memref<2x256xf32, #tpu.memory_space<vmem>>, vector<1x256xf32>,
    %c0_i32_25 = arith.constant 0 : i32
    %53 = arith.cmpi eq, %arg2, %c0_i32_25 : i32
    %54 = arith.extui %53 : i1 to i32
    %c0_i32_26 = arith.constant 0 : i32
    %55 = arith.cmpi ne, %54, %c0_i32_26 : i32
    scf.if %55 {
      %c0_27 = arith.constant 0 : index
      %c0_28 = arith.constant 0 : index
      %56 = vector.load %arg7[%c0_27, %c0_28] : memref<2x256xf32, #tpu.memory_space<vmem>>, vector<2x256xf32>
      %cst_29 = arith.constant dense<0.000000e+00> : vector<2xf32>
      %57 = vector.multi_reduction <add>, %56, %cst_29 [1] : vector<2x256xf32> to vector<2xf32>
      %58 = vector.shape_cast %57 : vector<2xf32> to vector<2x1xf32>
      %59 = vector.shape_cast %58 : vector<2x1xf32> to vector<2x1xf32>
      %60 = vector.broadcast %59 : vector<2x1xf32> to vector<2x128xf32>
      %c0_30 = arith.constant 0 : index
      %c0_31 = arith.constant 0 : index
      %c0_32 = arith.constant 0 : index
      %61 = vector.load %arg6[%c0_30, %c0_31, %c0_32] : memref<1x2x128xf32, #tpu.memory_space<vmem>>, vector<1x2x128xf32>
      %62 = vector.shape_cast %61 : vector<1x2x128xf32> to vector<2x128xf32>
      %63 = vector.shape_cast %60 : vector<2x128xf32> to vector<1x2x128xf32>
      tpu.vector_store %arg6[%c0_30, %c0_31, %c0_32], %63 {strides = array<i32>} : memref<1x2x128xf32, #tpu.memory_space<vmem>>, vector<1x2x128xf32>,
    } else {
    }
    return
  }
  func.func @transform_0(%arg0: i32, %arg1: i32, %arg2: i32) -> (i32, i32, i32) {
    %c1_i32 = arith.constant 1 : i32
    %0 = arith.muli %arg1, %c1_i32 : i32
    %1 = arith.addi %0, %arg2 : i32
    %c0_i32 = arith.constant 0 : i32
    %c0_i32_0 = arith.constant 0 : i32
    return %arg0, %c0_i32, %1 : i32, i32, i32
  }
  func.func @transform_1(%arg0: i32, %arg1: i32, %arg2: i32) -> (i32, i32, i32) {
    %c1_i32 = arith.constant 1 : i32
    %0 = arith.muli %arg1, %c1_i32 : i32
    %1 = arith.addi %0, %arg2 : i32
    %c0_i32 = arith.constant 0 : i32
    %c0_i32_0 = arith.constant 0 : i32
    return %arg0, %c0_i32, %1 : i32, i32, i32
  }
  func.func @transform_2(%arg0: i32, %arg1: i32, %arg2: i32) -> (i32, i32, i32) {
    %c1_i32 = arith.constant 1 : i32
    %0 = arith.muli %arg1, %c1_i32 : i32
    %1 = arith.addi %0, %arg2 : i32
    %c0_i32 = arith.constant 0 : i32
    %c0_i32_0 = arith.constant 0 : i32
    return %arg0, %c0_i32, %1 : i32, i32, i32
  }
  func.func @transform_3(%arg0: i32, %arg1: i32, %arg2: i32) -> (i32, i32, i32) {
    %c1_i32 = arith.constant 1 : i32
    %0 = arith.muli %arg0, %c1_i32 : i32
    %1 = arith.addi %0, %arg1 : i32
    %c0_i32 = arith.constant 0 : i32
    %c0_i32_0 = arith.constant 0 : i32
    %c0_i32_1 = arith.constant 0 : i32
    return %1, %c0_i32, %c0_i32_0 : i32, i32, i32
  }
}

</mosaic_0001>

<llo_original>
// kernel: tpu_custom_call.1
$region0: #{tpu_custom_call.1}
  #allocation0 [shape = 'u32[]', space=smem, size = 0x4, offset = 0x4, fixed_abs, tag = 'smem constant byte address 0x4 - core index']
  #allocation1 [shape = 'u32[144,128]{1,0:T(1,128)}', space=vmem, size = 0x12000, scoped, tag = 'internal scratch']
  #allocation2 [shape = 'f32[2,256]{1,0:T(2,128)}', space=vmem, size = 0x800, scoped, tag = 'scratch operand']
  %s0 = inlined_call_operand.hbm [shape: f32[2,4,256], index: 0, kind: input, shape index: {}]
  %s1 = inlined_call_operand.hbm [shape: s32[2,1,256], index: 1, kind: input, shape index: {}]
  %s2 = inlined_call_operand.vmem [shape: f32[2,1,256], index: 2, kind: input, shape index: {}]
  %s3 = inlined_call_operand.hbm [shape: f32[2,2,128], index: 3, kind: output, shape index: {}]
  %s4 = sld [smem:[#allocation0]]
  $region61: #{tpu_custom_call.1} parent=0
    _
  %s6 = ssub.s32 1, %s4
  %s7 = scalar_select 0, %s6, %s4
  $region1: #{tpu_custom_call.1} parent=0
    #allocation3 [shape = 'u8[8192]{0}', space=vmem, size = 0x2000, scoped, tag = 'input window, operand 0']
    #allocation4 [shape = 's32[2]{0}', space=sflag, size = 0x8, scoped, tag = 'scoped memory for tpu_custom_call.1']
    #allocation5 [shape = 's32[2]{0}', space=sflag, size = 0x8, scoped, tag = 'scoped memory for tpu_custom_call.1']
    #allocation6 [shape = 'u8[2048]{0}', space=vmem, size = 0x800, scoped, tag = 'input window, operand 1']
    #allocation7 [shape = 's32[2]{0}', space=sflag, size = 0x8, scoped, tag = 'scoped memory for tpu_custom_call.1']
    #allocation8 [shape = 'u8[2048]{0}', space=vmem, size = 0x800, scoped, tag = 'output window, operand 0']
    %8 = vsyncpa [#allocation4], 0
    %s9 = scalar_lea.sflag [#allocation4], 1
    %10 = vsyncpa %s9, 0
    %11 = vsyncpa [#allocation7], 0
    %s12 = scalar_lea.sflag [#allocation7], 1
    %13 = vsyncpa %s12, 0
    %14 = vsyncpa [#allocation5], 0
    %s15 = scalar_lea.sflag [#allocation5], 1
    %16 = vsyncpa %s15, 0
    loop: start=0, step=1, limit=4
    $region2: #{tpu_custom_call.1} parent=1 // loop_pre_header
      _
    $region3: #{tpu_custom_call.1} parent=1 // loop_header
      %s18 = sphi 0, %s22
      %p19 = scmp.ge.s32.totalorder %s18, 4
      %s25 = sphi 0, %s44
      %s26 = sphi 0, %s40
      %s27 = sphi 0, %s36
      %s28 = sphi 0, %s25
      %s29 = sphi 0, %s26
      %s30 = sphi 0, %s27
      %s31 = sphi 0, %s28
      %s32 = sphi 0, %s29
      %s33 = sphi 0, %s30
      %s51 = sphi 0, %s53
      %s54 = sphi 0, %s51
      %s55 = sphi 0, %s54
      %s71 = sphi 0, %s55
      %s81 = sphi 0, %s83
      %s84 = sphi 0, %s81
      %s85 = sphi 0, %s84
      %s101 = sphi 0, %s85
      %s111 = sphi 0, %s113
      %s114 = sphi 0, %s111
      %s115 = sphi 0, %s114
      %s131 = sphi 0, %s115
      %s139 = sphi 0, %s141
      %s142 = sphi 0, %s139
      %s143 = sphi 0, %s142
      %s159 = sphi 0, %s143
    $region4: #{tpu_custom_call.1} parent=1 // loop_header_branch
      %21 = sbr.rel (%p19) target = $region8
    $region5: #{tpu_custom_call.1} parent=1 // loop_body
      %s23 = ssub.s32 %s18, 1
      %s24 = ssub.s32 %s18, 2
      %s34 = sadd.s32 1, %s27
      %p35 = scmp.ge.s32.totalorder %s34, 1
      %s36 = scalar_select %p35, 0, %s34
      %s37 = sadd.s32 1, %s26
      %s38 = scalar_select %p35, %s37, %s26
      %p39 = scmp.ge.s32.totalorder %s38, 1
      %s40 = scalar_select %p39, 0, %s38
      %s41 = sadd.s32 1, %s25
      %s42 = scalar_select %p39, %s41, %s25
      %p43 = scmp.ge.s32.totalorder %s42, 2
      %s44 = scalar_select %p43, 0, %s42
      %s45 = sadd.s32 %s26, %s27
      %s46 = sadd.s32 %s40, %s36
      %s47 = ssub.s32 %s25, %s44
      %s48 = ssub.s32 %s45, %s46
      %s49 = sor.u32 %s47, %s48
      %p50 = scmp.eq.s32.totalorder %s49, 0
      %s52 = sadd.s32 %s51, 1
      %s53 = scalar_select %p50, %s51, %s52
      %p56 = pneg %p50
      %p57 = scmp.eq.s32.totalorder %s18, 1
      %p58 = por %p56, %p57
      %p59 = scmp.ne.s32.totalorder %s51, %s54
      %p60 = scmp.eq.s32.totalorder %s18, 0
      %p61 = por %p59, %p60
      %p62 = scmp.ne.s32.totalorder %s51, %s54
      %p63 = scmp.eq.s32.totalorder %s23, 1
      %p64 = por %p62, %p63
      %p65 = scmp.ne.s32.totalorder %s54, %s55
      %p66 = scmp.eq.s32.totalorder %s23, 0
      %p67 = por %p65, %p66
      %p68 = scmp.ne.s32.totalorder %s54, %s55
      %p69 = scmp.eq.s32.totalorder %s24, 1
      %p70 = por %p68, %p69
      %p72 = scmp.ne.s32.totalorder %s55, %s71
      %p73 = scmp.eq.s32.totalorder %s24, 0
      %p74 = por %p72, %p73
      %s75 = sadd.s32 %s26, %s27
      %s76 = sadd.s32 %s40, %s36
      %s77 = ssub.s32 %s25, %s44
      %s78 = ssub.s32 %s75, %s76
      %s79 = sor.u32 %s77, %s78
      %p80 = scmp.eq.s32.totalorder %s79, 0
      %s82 = sadd.s32 %s81, 1
      %s83 = scalar_select %p80, %s81, %s82
      %p86 = pneg %p80
      %p87 = scmp.eq.s32.totalorder %s18, 1
      %p88 = por %p86, %p87
      %p89 = scmp.ne.s32.totalorder %s81, %s84
      %p90 = scmp.eq.s32.totalorder %s18, 0
      %p91 = por %p89, %p90
      %p92 = scmp.ne.s32.totalorder %s81, %s84
      %p93 = scmp.eq.s32.totalorder %s23, 1
      %p94 = por %p92, %p93
      %p95 = scmp.ne.s32.totalorder %s84, %s85
      %p96 = scmp.eq.s32.totalorder %s23, 0
      %p97 = por %p95, %p96
      %p98 = scmp.ne.s32.totalorder %s84, %s85
      %p99 = scmp.eq.s32.totalorder %s24, 1
      %p100 = por %p98, %p99
      %p102 = scmp.ne.s32.totalorder %s85, %s101
      %p103 = scmp.eq.s32.totalorder %s24, 0
      %p104 = por %p102, %p103
      %s105 = sadd.s32 %s26, %s27
      %s106 = sadd.s32 %s40, %s36
      %s107 = ssub.s32 %s25, %s44
      %s108 = ssub.s32 %s105, %s106
      %s109 = sor.u32 %s107, %s108
      %p110 = scmp.eq.s32.totalorder %s109, 0
      %s112 = sadd.s32 %s111, 1
      %s113 = scalar_select %p110, %s111, %s112
      %p116 = pneg %p110
      %p117 = scmp.eq.s32.totalorder %s18, 1
      %p118 = por %p116, %p117
      %p119 = scmp.ne.s32.totalorder %s111, %s114
      %p120 = scmp.eq.s32.totalorder %s18, 0
      %p121 = por %p119, %p120
      %p122 = scmp.ne.s32.totalorder %s111, %s114
      %p123 = scmp.eq.s32.totalorder %s23, 1
      %p124 = por %p122, %p123
      %p125 = scmp.ne.s32.totalorder %s114, %s115
      %p126 = scmp.eq.s32.totalorder %s23, 0
      %p127 = por %p125, %p126
      %p128 = scmp.ne.s32.totalorder %s114, %s115
      %p129 = scmp.eq.s32.totalorder %s24, 1
      %p130 = por %p128, %p129
      %p132 = scmp.ne.s32.totalorder %s115, %s131
      %p133 = scmp.eq.s32.totalorder %s24, 0
      %p134 = por %p132, %p133
      %s135 = sadd.s32 %s25, %s26
      %s136 = sadd.s32 %s44, %s40
      %s137 = ssub.s32 %s135, %s136
      %p138 = scmp.eq.s32.totalorder %s137, 0
      %s140 = sadd.s32 %s139, 1
      %s141 = scalar_select %p138, %s139, %s140
      %p144 = pneg %p138
      %p145 = scmp.eq.s32.totalorder %s18, 1
      %p146 = por %p144, %p145
      %p147 = scmp.ne.s32.totalorder %s139, %s142
      %p148 = scmp.eq.s32.totalorder %s18, 0
      %p149 = por %p147, %p148
      %p150 = scmp.ne.s32.totalorder %s139, %s142
      %p151 = scmp.eq.s32.totalorder %s23, 1
      %p152 = por %p150, %p151
      %p153 = scmp.ne.s32.totalorder %s142, %s143
      %p154 = scmp.eq.s32.totalorder %s23, 0
      %p155 = por %p153, %p154
      %p156 = scmp.ne.s32.totalorder %s142, %s143
      %p157 = scmp.eq.s32.totalorder %s24, 1
      %p158 = por %p156, %p157
      %p160 = scmp.ne.s32.totalorder %s143, %s159
      %p161 = scmp.eq.s32.totalorder %s24, 0
      %p162 = por %p160, %p161
      %p163 = scmp.le.s32.totalorder 1, %s18
      %p164 = scmp.lt.s32.totalorder %s18, 3
      %p165 = pnand %p163, %p164
      %p166 = pneg %p165
      // Predicated region
      $region9: #{tpu_custom_call.1} parent=5 // pred_check
        _
      $region10: #{tpu_custom_call.1} parent=5 // pred_check_branch
        %168 = sbr.rel (%p165) target = $region12
      $region11: #{tpu_custom_call.1} parent=5 // pred_region
        %s169 = ssub.s32 %s18, 1
      $region12: #{tpu_custom_call.1} parent=5 // pred_fallthru
        _
      %p170 = scmp.lt.s32.totalorder %s18, 2
      // Predicated region
      $region13: #{tpu_custom_call.1} parent=5 // pred_check
        %p171 = pneg %p170
      $region14: #{tpu_custom_call.1} parent=5 // pred_check_branch
        %173 = sbr.rel (%p171) target = $region16
      $region15: #{tpu_custom_call.1} parent=5 // pred_region
        // Predicated region
        $region17: #{tpu_custom_call.1} parent=15 // pred_check
          %p174 = pneg %p61
        $region18: #{tpu_custom_call.1} parent=15 // pred_check_branch
          %176 = sbr.rel (%p174) target = $region20
        $region19: #{tpu_custom_call.1} parent=15 // pred_region
          %s177 = sand.u32 %s51, 1
          %s178 = scalar_lea.sflag [#allocation4], %s177
          %s179 = sand.u32 %s51, 1
          %s180 = smul.addr %s179, 8
          %s181 = scalar_lea.vmem [#allocation3], %s180
          %s182 = sadd.s32 %s26, %s27
          %s183 = smul.u32 2, %s182
          %s185 = ssub.s32 128, 128
          %186 = vsyncadd %s178, %s185
          %s187 = smul.addr %s25, 2
          %s188 = sadd.s32 %s183, %s187
          %s189 = smul.addr %s188, 64
          %s190 = scalar_lea.hbm %s0, %s189
          %s192 = sshll.u32 %s181, 4
          %s193 = int_to_ptr.vmem [resolvable:$true] %s192
          %195 = dma.hbm_to_vmem [thread:$0]  %s190, 128, %s193, %s178
        $region20: #{tpu_custom_call.1} parent=15 // pred_fallthru
          _
        // Predicated region
        $region21: #{tpu_custom_call.1} parent=15 // pred_check
          %p196 = pneg %p91
        $region22: #{tpu_custom_call.1} parent=15 // pred_check_branch
          %198 = sbr.rel (%p196) target = $region24
        $region23: #{tpu_custom_call.1} parent=15 // pred_region
          %s199 = sand.u32 %s81, 1
          %s200 = scalar_lea.sflag [#allocation7], %s199
          %s201 = sand.u32 %s81, 1
          %s202 = smul.addr %s201, 2
          %s203 = scalar_lea.vmem [#allocation6], %s202
          %s204 = sadd.s32 %s26, %s27
          %s205 = smul.u32 2, %s204
          %s207 = ssub.s32 32, 32
          %208 = vsyncadd %s200, %s207
          %s209 = smul.addr %s25, 2
          %s210 = sadd.s32 %s205, %s209
          %s211 = smul.addr %s210, 16
          %s212 = scalar_lea.hbm %s1, %s211
          %s214 = sshll.u32 %s203, 4
          %s215 = int_to_ptr.vmem [resolvable:$true] %s214
          %217 = dma.hbm_to_vmem [thread:$0]  %s212, 32, %s215, %s200
        $region24: #{tpu_custom_call.1} parent=15 // pred_fallthru
          _
        // Predicated region
        $region25: #{tpu_custom_call.1} parent=15 // pred_check
          %p218 = pneg %p121
        $region26: #{tpu_custom_call.1} parent=15 // pred_check_branch
          %220 = sbr.rel (%p218) target = $region28
        $region27: #{tpu_custom_call.1} parent=15 // pred_region
          %s221 = sadd.s32 %s26, %s27
          %s222 = smul.u32 2, %s221
          %p223 = scmp.lt.s32.totalorder %s25, 1
          %s224 = scalar_select %p223, %s25, 1
          %p225 = scmp.lt.s32.totalorder %s222, 1
          %s226 = scalar_select %p225, %s222, 1
          %s227 = smul.addr %s224, 2
          %s228 = sadd.s32 %s226, %s227
          %s229 = scalar_lea.vmem %s2, %s228
          %s230 = sadd.s32 %s26, %s27
          %s231 = smul.u32 2, %s230
        $region28: #{tpu_custom_call.1} parent=15 // pred_fallthru
          _
      $region16: #{tpu_custom_call.1} parent=5 // pred_fallthru
        _
      %p232 = scmp.le.s32.totalorder 1, %s18
      %p233 = scmp.lt.s32.totalorder %s18, 3
      %p234 = pnand %p232, %p233
      %p235 = pneg %p234
      // Predicated region
      $region29: #{tpu_custom_call.1} parent=5 // pred_check
        _
      $region30: #{tpu_custom_call.1} parent=5 // pred_check_branch
        %237 = sbr.rel (%p234) target = $region32
      $region31: #{tpu_custom_call.1} parent=5 // pred_region
        %s238 = ssub.s32 %s18, 1
        %s239 = sand.u32 %s54, 1
        %s240 = scalar_lea.sflag [#allocation4], %s239
        %s241 = sand.u32 %s54, 1
        %s242 = smul.addr %s241, 8
        %s243 = scalar_lea.vmem [#allocation3], %s242
        // Predicated region
        $region33: #{tpu_custom_call.1} parent=31 // pred_check
          %p244 = pneg %p67
        $region34: #{tpu_custom_call.1} parent=31 // pred_check_branch
          %246 = sbr.rel (%p244) target = $region36
        $region35: #{tpu_custom_call.1} parent=31 // pred_region
          %247 = dma.done %s240, 128
        $region36: #{tpu_custom_call.1} parent=31 // pred_fallthru
          _
        %s248 = sand.u32 %s84, 1
        %s249 = scalar_lea.sflag [#allocation7], %s248
        %s250 = sand.u32 %s84, 1
        %s251 = smul.addr %s250, 2
        %s252 = scalar_lea.vmem [#allocation6], %s251
        // Predicated region
        $region37: #{tpu_custom_call.1} parent=31 // pred_check
          %p253 = pneg %p97
        $region38: #{tpu_custom_call.1} parent=31 // pred_check_branch
          %255 = sbr.rel (%p253) target = $region40
        $region39: #{tpu_custom_call.1} parent=31 // pred_region
          %256 = dma.done %s249, 32
        $region40: #{tpu_custom_call.1} parent=31 // pred_fallthru
          _
        %s257 = sand.u32 %s54, 1
        %s258 = scalar_lea.sflag [#allocation4], %s257
        %s259 = sand.u32 %s54, 1
        %s260 = smul.addr %s259, 8
        %s261 = scalar_lea.vmem [#allocation3], %s260
        %p262 = pneg %p67
        %p263 = pneg %p64
        %s264 = sand.u32 %s84, 1
        %s265 = scalar_lea.sflag [#allocation7], %s264
        %s266 = sand.u32 %s84, 1
        %s267 = smul.addr %s266, 2
        %s268 = scalar_lea.vmem [#allocation6], %s267
        %p269 = pneg %p97
        %p270 = pneg %p94
        %s271 = sadd.s32 %s29, %s30
        %s272 = smul.u32 2, %s271
        %p273 = scmp.lt.s32.totalorder %s28, 1
        %s274 = scalar_select %p273, %s28, 1
        %p275 = scmp.lt.s32.totalorder %s272, 1
        %s276 = scalar_select %p275, %s272, 1
        %s277 = smul.addr %s274, 2
        %s278 = sadd.s32 %s276, %s277
        %s279 = scalar_lea.vmem %s2, %s278
        %p280 = pneg %p127
        %p281 = pneg %p124
        %p282 = pneg %p155
        %p283 = pneg %p152
        %s284 = sand.u32 %s142, 1
        %s285 = scalar_lea.sflag [#allocation5], %s284
        %s286 = sand.u32 %s142, 1
        %s287 = smul.addr %s286, 2
        %s288 = scalar_lea.vmem [#allocation8], %s287
        %s289 = sadd.s32 %s29, %s30
        %s290 = smul.u32 2, %s289
        %s291 = sadd.s32 %s29, %s30
        %s292 = smul.u32 2, %s291
        %s293 = sadd.s32 %s29, %s30
        %s294 = smul.u32 2, %s293
        %p295 = scmp.lt.s32.totalorder %s28, 1
        %s296 = scalar_select %p295, %s28, 1
        %p297 = scmp.lt.s32.totalorder %s294, 1
        %s298 = scalar_select %p297, %s294, 1
        %s299 = smul.addr %s296, 2
        %s300 = sadd.s32 %s298, %s299
        %s301 = scalar_lea.vmem %s2, %s300
        %s302 = sadd.s32 %s29, %s30
        %s303 = smul.u32 2, %s302
        %s304 = sadd.s32 %s28, %s29
        %p305 = scmp.eq.s32.totalorder %s30, 0
        // Predicated region
        $region41: #{tpu_custom_call.1} parent=31 // pred_check
          %p306 = pneg %p305
        $region42: #{tpu_custom_call.1} parent=31 // pred_check_branch
          %308 = sbr.rel (%p306) target = $region44
        $region43: #{tpu_custom_call.1} parent=31 // pred_region
          %309 = vst [vmem:[#allocation2] sm:$0xf] 0.0
        $region44: #{tpu_custom_call.1} parent=31 // pred_fallthru
          _
        %v310 = vld [vmem:[%s243] sm:$0xff]
        %v311 = vld [vmem:[%s252] sm:$0x3]
        %s312 = sadd.s32 %s29, %s30
        %s313 = smul.u32 %s312, 256
        %v314 = vlaneseq
        %v315 = vand.u32 %v314, 127
        %v316 = vadd.s32 %v315, 128
        %s317 = ssub.s32 256, %s313
        %v318 = vstv %s317
        %vm319 = vcmp.lt.s32.totalorder %v315, %v318
        %vm320 = vcmp.lt.s32.totalorder %v316, %v318
        %vm321 = vcmp.ge.s32.totalorder %v311, 0
        %v322 = vsel %vm321, 1, 0
        %v323 = vlaneseq
        %v324 = vshrl.u32 %v323, 7
        %v325 = vsub.s32 0, %v324
        %v326 = vrot.slane %v322, %v325
        %v327 = vlaneseq
        %v328 = vshrl.u32 %v327, 7
        %v329 = vsub.s32 1, %v328
        %v330 = vrot.slane %v322, %v329
        %vm331 = vcmp.ne.s32.totalorder %v326, 0
        %vm332 = vcmp.ne.s32.totalorder %v330, 0
        %vm333 = vmand %vm319, %vm331
        %vm334 = vmand %vm320, %vm332
        %vm335 = vcmp.ne.s32.totalorder %v311, 255
        %v336 = vsel %vm335, 1, 0
        %v337 = vlaneseq
        %v338 = vshrl.u32 %v337, 7
        %v339 = vsub.s32 0, %v338
        %v340 = vrot.slane %v336, %v339
        %v341 = vlaneseq
        %v342 = vshrl.u32 %v341, 7
        %v343 = vsub.s32 1, %v342
        %v344 = vrot.slane %v336, %v343
        %vm345 = vcmp.ne.s32.totalorder %v340, 0
        %vm346 = vcmp.ne.s32.totalorder %v344, 0
        %vm347 = vmand %vm333, %vm345
        %vm348 = vmand %vm334, %vm346
        %v349 = vlaneseq
        %v350 = vshrl.u32 %v349, 7
        %v351 = vsub.s32 0, %v350
        %v352 = vrot.slane %v311, %v351
        %v353 = vlaneseq
        %v354 = vshrl.u32 %v353, 7
        %v355 = vsub.s32 1, %v354
        %v356 = vrot.slane %v311, %v355
        %v357 = vsel %vm347, %v352, 0
        %v358 = vsel %vm348, %v356, 0
        %v360 = vcombine.high %v310, %v310
        %vm362 = vcmask 1043456
        %v363 = vsel %vm362, %v310, -inf
        %v364 = vrot.slane %v363, 4
        %v365 = vmax.f32 %v363, %v364
        %v366 = vrot.slane %v365, 2
        %v367 = vmax.f32 %v365, %v366
        %v368 = vrot.slane %v367, 1
        %v369 = vmax.f32 %v367, %v368
        %v370 = vsel %vm362, %v360, -inf
        %v371 = vrot.slane %v370, 4
        %v372 = vmax.f32 %v370, %v371
        %v373 = vrot.slane %v372, 2
        %v374 = vmax.f32 %v372, %v373
        %v375 = vrot.slane %v374, 1
        %v376 = vmax.f32 %v374, %v375
        %v379 = vcombine.low %v369, %v376
        %v381 = vsub.f32 %v310, %v379
        %v382 = vmul.f32 %v381, 1.442695
        %v383 = vpow.pop %v382
        %v385 = vcombine.high %v383, %v383
        %v387 = vsel %vm362, %v383, 0.0
        %v388 = vrot.slane %v387, 4
        %v389 = vadd.f32 %v387, %v388
        %v390 = vrot.slane %v389, 2
        %v391 = vadd.f32 %v389, %v390
        %v392 = vrot.slane %v391, 1
        %v393 = vadd.f32 %v391, %v392
        %v394 = vsel %vm362, %v385, 0.0
        %v395 = vrot.slane %v394, 4
        %v396 = vadd.f32 %v394, %v395
        %v397 = vrot.slane %v396, 2
        %v398 = vadd.f32 %v396, %v397
        %v399 = vrot.slane %v398, 1
        %v400 = vadd.f32 %v398, %v399
        %v401 = vlog2.pop %v393
        %v402 = vmul.f32 %v401, 0.6931472
        %v403 = vlog2.pop %v400
        %v404 = vmul.f32 %v403, 0.6931472
        %v405 = vlaneseq
        %v406 = vshrl.u32 %v405, 7
        %v407 = vlaneseq
        %v408 = vshrl.u32 %v407, 7
        %v409 = vsub.s32 0, %v408
        %v410 = vrot.slane %v357, %v409
        %v411 = vlaneseq
        %v412 = vshrl.u32 %v411, 7
        %v413 = vsub.s32 0, %v412
        %v414 = vrot.slane %v358, %v413
        %vm415 = vcmp.eq.s32.totalorder %v406, %v410
        %vm416 = vcmp.eq.s32.totalorder %v406, %v414
        %v418 = vcombine.high %v381, %v381
        %v420 = vsel %vm415, %v381, 0.0
        %v421 = vsel %vm416, %v418, 0.0
        %v422 = vsel %vm362, %v420, 0.0
        %v423 = vrot.slane %v422, 4
        %v424 = vadd.f32 %v422, %v423
        %v425 = vrot.slane %v424, 2
        %v426 = vadd.f32 %v424, %v425
        %v427 = vrot.slane %v426, 1
        %v428 = vadd.f32 %v426, %v427
        %v429 = vsel %vm362, %v421, 0.0
        %v430 = vrot.slane %v429, 4
        %v431 = vadd.f32 %v429, %v430
        %v432 = vrot.slane %v431, 2
        %v433 = vadd.f32 %v431, %v432
        %v434 = vrot.slane %v433, 1
        %v435 = vadd.f32 %v433, %v434
        %v436 = vsub.f32 %v402, %v428
        %v437 = vsub.f32 %v404, %v435
        %v438 = vld [vmem:[%s301] sm:$0x3]
        %v440 = vlaneseq
        %v441 = vshrl.u32 %v440, 7
        %v442 = vsub.s32 0, %v441
        %v443 = vrot.slane %v438, %v442
        %v444 = vlaneseq
        %v445 = vshrl.u32 %v444, 7
        %v446 = vsub.s32 1, %v445
        %v447 = vrot.slane %v438, %v446
        %v450 = vmul.f32 %v436, %v443
        %v451 = vmul.f32 %v437, %v447
        %v452 = vld [vmem:[#allocation2] ss:$2 sm:$0x3]
        %v453 = vsel %vm347, %v450, 0.0
        %v454 = vsel %vm348, %v451, 0.0
        %v457 = vcombine.low %v453, %v454
        %v459 = vunpack.c.l.s4 1966171168
        %v460 = vunpack.c.0.s8 %v459
        %v461 = vlaneseq
        %v462 = vshrl.u32 %v461, 7
        %v463 = vsub.s32 %v460, %v462
        %v464 = vrot.slane %v457, %v463
        %v466 = vunpack.c.l.s4 1966171168
        %v467 = vunpack.c.0.s8 %v466
        %v468 = vlaneseq
        %v469 = vshrl.u32 %v468, 7
        %v470 = vsub.s32 %v467, %v469
        %v471 = vrot.slane %v464, %v470
        %v473 = vadd.f32 %v452, %v471
        %v474 = vlaneseq
        %vm475 = vcmp.ge.s32.totalorder %v474, 0
        %vm476 = vcmp.lt.s32.totalorder %v474, 256
        %vm477 = vmand %vm475, %vm476
        %478 = vst.msk [vmem:[#allocation2] ss:$2 sm:$0x3] %vm477, %v473
        %s479 = scalar_lea.vmem [#allocation2], 1
        %v480 = vld [vmem:[%s479] ss:$2 sm:$0x3]
        %v481 = vsel %vm347, 1.0, 0.0
        %v482 = vsel %vm348, 1.0, 0.0
        %v485 = vcombine.low %v481, %v482
        %v487 = vunpack.c.l.s4 1966171168
        %v488 = vunpack.c.0.s8 %v487
        %v489 = vlaneseq
        %v490 = vshrl.u32 %v489, 7
        %v491 = vsub.s32 %v488, %v490
        %v492 = vrot.slane %v485, %v491
        %v494 = vunpack.c.l.s4 1966171168
        %v495 = vunpack.c.0.s8 %v494
        %v496 = vlaneseq
        %v497 = vshrl.u32 %v496, 7
        %v498 = vsub.s32 %v495, %v497
        %v499 = vrot.slane %v492, %v498
        %v501 = vadd.f32 %v480, %v499
        %502 = vst.msk [vmem:[%s479] ss:$2 sm:$0x3] %vm477, %v501
        // Predicated region
        $region45: #{tpu_custom_call.1} parent=31 // pred_check
          %p503 = pneg %p305
        $region46: #{tpu_custom_call.1} parent=31 // pred_check_branch
          %505 = sbr.rel (%p503) target = $region48
        $region47: #{tpu_custom_call.1} parent=31 // pred_region
          %v506 = vld [vmem:[#allocation2] sm:$0xf]
          %v509 = vunpack.c.l.s4 1983009808
          %v510 = vunpack.c.0.s8 %v509
          %v511 = vlaneseq
          %v512 = vshrl.u32 %v511, 7
          %v513 = vsub.s32 %v510, %v512
          %v514 = vrot.slane %v506, %v513
          %v515 = vcombine.high %v514, %v514
          %vm518 = vcmask 1041408
          %v519 = vsel %vm518, %v514, 0.0
          %v520 = vsel %vm518, %v515, 0.0
          %v521 = vadd.f32 %v519, %v520
          %522 = vadd.xlane.f32.xlu0 %v521
          %v523 = vpop.xlane.xlu0 %522
          %524 = vst [vmem:[%s288] sm:$0x3] %v523
        $region48: #{tpu_custom_call.1} parent=31 // pred_fallthru
          _
        %s525 = sand.u32 %s142, 1
        %s526 = scalar_lea.sflag [#allocation5], %s525
        %s527 = sand.u32 %s142, 1
        %s528 = smul.addr %s527, 2
        %s529 = scalar_lea.vmem [#allocation8], %s528
        // Predicated region
        $region49: #{tpu_custom_call.1} parent=31 // pred_check
          %p530 = pneg %p152
        $region50: #{tpu_custom_call.1} parent=31 // pred_check_branch
          %532 = sbr.rel (%p530) target = $region52
        $region51: #{tpu_custom_call.1} parent=31 // pred_region
          %s533 = sadd.s32 %s28, %s29
          %s535 = ssub.s32 32, 32
          %536 = vsyncadd %s526, %s535
          %s537 = smul.addr %s533, 32
          %s538 = scalar_lea.hbm %s3, %s537
          %s540 = sshll.u32 %s529, 4
          %s541 = int_to_ptr.vmem [resolvable:$true] %s540
          %543 = dma.vmem_to_hbm [thread:$0]  %s541, 32, %s538, %s526
        $region52: #{tpu_custom_call.1} parent=31 // pred_fallthru
          _
      $region32: #{tpu_custom_call.1} parent=5 // pred_fallthru
        _
      %p544 = scmp.le.s32.totalorder 2, %s18
      // Predicated region
      $region53: #{tpu_custom_call.1} parent=5 // pred_check
        %p545 = pneg %p544
      $region54: #{tpu_custom_call.1} parent=5 // pred_check_branch
        %547 = sbr.rel (%p545) target = $region56
      $region55: #{tpu_custom_call.1} parent=5 // pred_region
        %s548 = ssub.s32 %s18, 2
        // Predicated region
        $region57: #{tpu_custom_call.1} parent=55 // pred_check
          %p549 = pneg %p158
        $region58: #{tpu_custom_call.1} parent=55 // pred_check_branch
          %551 = sbr.rel (%p549) target = $region60
        $region59: #{tpu_custom_call.1} parent=55 // pred_region
          %s552 = sand.u32 %s143, 1
          %s553 = scalar_lea.sflag [#allocation5], %s552
          %s554 = sand.u32 %s143, 1
          %s555 = smul.addr %s554, 2
          %s556 = scalar_lea.vmem [#allocation8], %s555
          %557 = dma.done %s553, 32
        $region60: #{tpu_custom_call.1} parent=55 // pred_fallthru
          _
      $region56: #{tpu_custom_call.1} parent=5 // pred_fallthru
        _
    $region6: #{tpu_custom_call.1} parent=1 // loop_footer
      %s22 = sadd.s32 1, %s18
    $region7: #{tpu_custom_call.1} parent=1 // loop_footer_branch
      %17 = sbr.rel target = $region3
    $region8: #{tpu_custom_call.1} parent=1 // loop_exit
      _
    %558 = vsyncpa [#allocation4], 1
    %s559 = scalar_lea.sflag [#allocation4], 1
    %560 = vsyncpa %s559, 1
    %561 = vsyncpa [#allocation7], 1
    %s562 = scalar_lea.sflag [#allocation7], 1
    %563 = vsyncpa %s562, 1
    %564 = vsyncpa [#allocation5], 1
    %s565 = scalar_lea.sflag [#allocation5], 1
    %566 = vsyncpa %s565, 1

</llo_original>
